<compile_context>
chip_gen: v7x
topology: tpu7x:2x2x1
jax: 0.10.0
libtpu: 0.0.40
codegen_flags: <defaults>
</compile_context>

<pallas_src>
import functools

import jax
import jax.numpy as jnp
from jax import lax
from jax.experimental import pallas as pl
from jax.experimental.pallas import tpu as pltpu

EPS = 1e-5
_TAPS = [(dy, dx) for dy in range(3) for dx in range(3)]
_OFFCENTER = [t for t in _TAPS if t != (1, 1)]          # 8 non-center taps


def _basic_block_kernel(x_ref, m_ref, w1_ref, w2_ref, b1_ref, b2_ref, out_ref, *,
                        spatial_w, hw_image):
    # x_ref  : (B_blk, Cp, H*W)   batch block; channels (padded) on sublanes.
    # m_ref  : (8, B_blk*H*W)     0/1 boundary masks, one row per non-center tap.
    # w1_ref : (Cp, 9*Cp)         conv1 weights, BN1 scale folded; col = tap*Cp + ci.
    # w2_ref : (Cp, 9*Cp)         conv2 weights, BN2 scale folded.
    # b1_ref : (Cp, 1)            BN1 shift (beta - mean*scale), zero in padded rows.
    # b2_ref : (Cp, 1)            BN2 shift.
    # out_ref: (B_blk, Cp, H*W)
    bblk = x_ref.shape[0]
    hw = bblk * hw_image

    # Fold the batch block into the lane axis: (B_blk, Cp, HW) -> (Cp, B_blk*HW).
    # hw_image is a multiple of 128, so this concat is vreg placement, not shuffles.
    x = jnp.concatenate([x_ref[b] for b in range(bblk)], axis=1).astype(jnp.float32)
    masks = m_ref[...]                                   # (8, B_blk*HW), f32 0/1

    def conv3x3(src, w_ref):
        # Build the (9*Cp, B_blk*HW) im2col patch matrix with lane rolls + host-built
        # boundary masks, then a single bf16 MXU matmul with f32 accumulation.
        pieces = []
        for dy, dx in _TAPS:
            off = (dy - 1) * spatial_w + (dx - 1)
            if off == 0:
                shifted = src
            else:
                shifted = pltpu.roll(src, shift=(-off) % hw, axis=1)
            if (dy, dx) != (1, 1):
                mrow = _OFFCENTER.index((dy, dx))
                shifted = shifted * masks[mrow:mrow + 1, :]
            pieces.append(shifted)
        # TODO(synk): per-tap accumulation once 9*Cp exceeds ~128 sublanes.
        patches = jnp.concatenate(pieces, axis=0).astype(w_ref.dtype)
        return jnp.dot(w_ref[...], patches, preferred_element_type=jnp.float32)

    # conv1 -> BN1 (scale folded into weights, shift added here) -> ReLU
    a = jnp.maximum(conv3x3(x, w1_ref) + b1_ref[...], 0.0)
    # conv2 -> BN2 -> identity residual (stride == 1) -> ReLU   (all f32)
    out = jnp.maximum(conv3x3(a, w2_ref) + b2_ref[...] + x, 0.0)

    # Unfold the lane axis back to (B_blk, Cp, HW); slices are 128-lane aligned.
    for b in range(bblk):
        out_ref[b] = out[:, b * hw_image:(b + 1) * hw_image].astype(out_ref.dtype)


def _boundary_masks(h, w, batch_block):
    """(8, batch_block*h*w) 0/1 f32 validity masks for the 8 non-center taps."""
    hw_blk = batch_block * h * w
    q = jnp.arange(hw_blk, dtype=jnp.int32)
    row = (q // w) % h          # intra-image row (also kills cross-image roll wrap)
    col = q % w
    rows = []
    for dy, dx in _OFFCENTER:
        valid = jnp.ones((hw_blk,), dtype=bool)
        if dy == 0:
            valid = jnp.logical_and(valid, row >= 1)
        elif dy == 2:
            valid = jnp.logical_and(valid, row <= h - 2)
        if dx == 0:
            valid = jnp.logical_and(valid, col >= 1)
        elif dx == 2:
            valid = jnp.logical_and(valid, col <= w - 2)
        rows.append(valid)
    return jnp.stack(rows).astype(jnp.float32)


def sparse_basic_block(x_nchw, w1, w2, bn1, bn2, *, batch_block=None,
                       mxu_dtype=jnp.bfloat16):
    """SparseBasicBlock(in_planes=C, planes=C, stride=1) forward (inference BN)."""
    n, c, h, w = x_nchw.shape
    hw = h * w
    cp = ((c + 7) // 8) * 8          # pad channels to a sublane multiple
    pad_c = cp - c

    if batch_block is None:
        batch_block = n              # fold whole batch (v5e/v6e); use n // 2 on v7x
    assert n % batch_block == 0, (n, batch_block)
    n_blocks = n // batch_block
    hw_blk = batch_block * hw

    # Flattened NCHW (no transposes), channels zero-padded to cp.
    x_flat = jnp.pad(x_nchw.reshape(n, c, hw), ((0, 0), (0, pad_c), (0, 0)))

    def fold(w_hwio, bn):
        # bn rows: [gamma, beta, running_mean, running_var]
        gamma, beta, mean, var = bn[0], bn[1], bn[2], bn[3]
        scale = gamma * lax.rsqrt(var.astype(jnp.float32) + EPS)       # (c,)
        shift = beta - mean * scale                                    # (c,)
        # (3,3,ci,co) -> (co,3,3,ci), fold BN scale into output-channel rows,
        # zero-pad both channel dims, flatten to (cp, 9*cp) with col = tap*cp + ci.
        wm = jnp.transpose(w_hwio, (3, 0, 1, 2)) * scale[:, None, None, None]
        wm = jnp.pad(wm, ((0, pad_c), (0, 0), (0, 0), (0, pad_c)))
        wm = wm.reshape(cp, 9 * cp).astype(mxu_dtype)                  # MXU operand
        sh = jnp.pad(shift, (0, pad_c)).reshape(cp, 1).astype(jnp.float32)
        return wm, sh

    w1m, b1 = fold(w1, bn1)
    w2m, b2 = fold(w2, bn2)
    masks = _boundary_masks(h, w, batch_block)                         # (8, hw_blk)

    kernel = functools.partial(_basic_block_kernel, spatial_w=w, hw_image=hw)
    out = pl.pallas_call(
        kernel,
        out_shape=jax.ShapeDtypeStruct((n, cp, hw), x_nchw.dtype),
        grid_spec=pltpu.PrefetchScalarGridSpec(
            num_scalar_prefetch=0,
            grid=(n_blocks,),
            in_specs=[
                pl.BlockSpec((batch_block, cp, hw), lambda i: (i, 0, 0)),
                pl.BlockSpec((8, hw_blk), lambda i: (0, 0)),
                pl.BlockSpec((cp, 9 * cp), lambda i: (0, 0)),
                pl.BlockSpec((cp, 9 * cp), lambda i: (0, 0)),
                pl.BlockSpec((cp, 1), lambda i: (0, 0)),
                pl.BlockSpec((cp, 1), lambda i: (0, 0)),
            ],
            out_specs=pl.BlockSpec((batch_block, cp, hw), lambda i: (i, 0, 0)),
        ),
        compiler_params=pltpu.CompilerParams(
            dimension_semantics=("parallel",)),
    )(x_flat, masks, w1m, w2m, b1, b2)

    return out[:, :c, :].reshape(n, c, h, w)


def _ref_basic_block(x_nchw, w1, w2, bn1, bn2):
    """Pure-JAX f32 reference (dense equivalent of the SCN block, stride=1)."""
    x = jnp.transpose(x_nchw, (0, 2, 3, 1)).astype(jnp.float32)
    dn = ('NHWC', 'HWIO', 'NHWC')

    def bn(a, p):
        g, b, m, v = p[0], p[1], p[2], p[3]
        return (a - m) * g / jnp.sqrt(v + EPS) + b

    a = lax.conv_general_dilated(x, w1, (1, 1), 'SAME', dimension_numbers=dn)
    a = jax.nn.relu(bn(a, bn1))
    a = lax.conv_general_dilated(a, w2, (1, 1), 'SAME', dimension_numbers=dn)
    a = bn(a, bn2)
    out = jax.nn.relu(a + x)
    return jnp.transpose(out, (0, 3, 1, 2)).astype(x_nchw.dtype)


if __name__ == "__main__":
    key = jax.random.PRNGKey(0)
    ks = jax.random.split(key, 12)

    # SparseBasicBlock(in_planes=4, planes=4, stride=1); batch=2, spatial=16x16
    N, C, H, W = 2, 4, 16, 16
    x = jax.random.normal(ks[0], (N, C, H, W), jnp.float32)

    # conv weights in HWIO layout (3, 3, Cin, Cout), no bias (matches SCN convs)
    w1 = 0.2 * jax.random.normal(ks[1], (3, 3, C, C), jnp.float32)
    w2 = 0.2 * jax.random.normal(ks[2], (3, 3, C, C), jnp.float32)

    # BN params: rows = [gamma, beta, running_mean, running_var]
    bn1 = jnp.stack([
        jax.random.uniform(ks[3], (C,), minval=0.5, maxval=1.5),
        0.1 * jax.random.normal(ks[4], (C,)),
        0.1 * jax.random.normal(ks[5], (C,)),
        jax.random.uniform(ks[6], (C,), minval=0.5, maxval=1.5),
    ]).astype(jnp.float32)
    bn2 = jnp.stack([
        jax.random.uniform(ks[7], (C,), minval=0.5, maxval=1.5),
        0.1 * jax.random.normal(ks[8], (C,)),
        0.1 * jax.random.normal(ks[9], (C,)),
        jax.random.uniform(ks[10], (C,), minval=0.5, maxval=1.5),
    ]).astype(jnp.float32)

    ref = _ref_basic_block(x, w1, w2, bn1, bn2)

    # f32-MXU mode: exact machinery check against the f32 reference (tight tol).
    out_f32 = jax.block_until_ready(
        sparse_basic_block(x, w1, w2, bn1, bn2, mxu_dtype=jnp.float32))
    assert out_f32.shape == (N, C, H, W), out_f32.shape
    if not bool(jnp.allclose(out_f32, ref, atol=1e-3, rtol=1e-3)):
        raise AssertionError("Pallas kernel (f32 MXU) does not match JAX reference")

    # Default bf16-MXU mode (production path): bf16 operands, f32 accumulation,
    # so tolerance vs the f32 reference is bf16-level, not f32-level.
    out = jax.block_until_ready(sparse_basic_block(x, w1, w2, bn1, bn2))
    assert out.shape == (N, C, H, W), out.shape
    if not bool(jnp.allclose(out, ref, atol=3e-2, rtol=3e-2)):
        raise AssertionError("Pallas kernel (bf16 MXU) does not match JAX reference")

    print("KERNEL_OK")
</pallas_src>

<mosaic_0001>
module attributes {stable_mosaic.version = 11 : i64} {
  func.func @_basic_block_kernel(%arg0: i32, %arg1: memref<2x8x256xf32, #tpu.memory_space<vmem>>, %arg2: memref<8x512xf32, #tpu.memory_space<vmem>>, %arg3: memref<8x72xf32, #tpu.memory_space<vmem>>, %arg4: memref<8x72xf32, #tpu.memory_space<vmem>>, %arg5: memref<8x1xf32, #tpu.memory_space<vmem>>, %arg6: memref<8x1xf32, #tpu.memory_space<vmem>>, %arg7: memref<2x8x256xf32, #tpu.memory_space<vmem>>) attributes {dimension_semantics = [#tpu.dimension_semantics<parallel>], iteration_bounds = array<i64: 1>, scalar_prefetch = 0 : i64, scratch_operands = 0 : i64, tpu.core_type = #tpu.core_type<tc>, window_params = [{transform_indices = @transform_0, window_bounds = array<i64: 2, 8, 256>}, {pipeline_mode = #tpu.pipeline_mode<synchronous>, transform_indices = @transform_1, window_bounds = array<i64: 8, 512>}, {pipeline_mode = #tpu.pipeline_mode<synchronous>, transform_indices = @transform_2, window_bounds = array<i64: 8, 72>}, {pipeline_mode = #tpu.pipeline_mode<synchronous>, transform_indices = @transform_3, window_bounds = array<i64: 8, 72>}, {pipeline_mode = #tpu.pipeline_mode<synchronous>, transform_indices = @transform_4, window_bounds = array<i64: 8, 1>}, {pipeline_mode = #tpu.pipeline_mode<synchronous>, transform_indices = @transform_5, window_bounds = array<i64: 8, 1>}, {transform_indices = @transform_6, window_bounds = array<i64: 2, 8, 256>}]} {
    %c0 = arith.constant 0 : index
    %c0_0 = arith.constant 0 : index
    %c0_1 = arith.constant 0 : index
    %0 = vector.load %arg1[%c0, %c0_0, %c0_1] : memref<2x8x256xf32, #tpu.memory_space<vmem>>, vector<1x8x256xf32>
    %1 = vector.shape_cast %0 : vector<1x8x256xf32> to vector<8x256xf32>
    %c1 = arith.constant 1 : index
    %c0_2 = arith.constant 0 : index
    %c0_3 = arith.constant 0 : index
    %2 = vector.load %arg1[%c1, %c0_2, %c0_3] : memref<2x8x256xf32, #tpu.memory_space<vmem>>, vector<1x8x256xf32>
    %3 = vector.shape_cast %2 : vector<1x8x256xf32> to vector<8x256xf32>
    %4 = tpu.concatenate %1, %3 in 1 : vector<8x256xf32>, vector<8x256xf32> -> vector<8x512xf32>
    %c0_4 = arith.constant 0 : index
    %c0_5 = arith.constant 0 : index
    %5 = vector.load %arg2[%c0_4, %c0_5] : memref<8x512xf32, #tpu.memory_space<vmem>>, vector<8x512xf32>
    %c17_i32 = arith.constant 17 : i32
    %6 = tpu.dynamic_rotate %4 by %c17_i32 dim 1 : vector<8x512xf32>, i32 -> vector<8x512xf32>
    %7 = vector.extract_strided_slice %5 {offsets = [0, 0], sizes = [1, 512], strides = [1, 1]} : vector<8x512xf32> to vector<1x512xf32>
    %8 = vector.broadcast %7 : vector<1x512xf32> to vector<8x512xf32>
    %9 = arith.mulf %6, %8 : vector<8x512xf32>
    %c16_i32 = arith.constant 16 : i32
    %10 = tpu.dynamic_rotate %4 by %c16_i32 dim 1 : vector<8x512xf32>, i32 -> vector<8x512xf32>
    %11 = vector.extract_strided_slice %5 {offsets = [1, 0], sizes = [1, 512], strides = [1, 1]} : vector<8x512xf32> to vector<1x512xf32>
    %12 = vector.broadcast %11 : vector<1x512xf32> to vector<8x512xf32>
    %13 = arith.mulf %10, %12 : vector<8x512xf32>
    %c15_i32 = arith.constant 15 : i32
    %14 = tpu.dynamic_rotate %4 by %c15_i32 dim 1 : vector<8x512xf32>, i32 -> vector<8x512xf32>
    %15 = vector.extract_strided_slice %5 {offsets = [2, 0], sizes = [1, 512], strides = [1, 1]} : vector<8x512xf32> to vector<1x512xf32>
    %16 = vector.broadcast %15 : vector<1x512xf32> to vector<8x512xf32>
    %17 = arith.mulf %14, %16 : vector<8x512xf32>
    %c1_i32 = arith.constant 1 : i32
    %18 = tpu.dynamic_rotate %4 by %c1_i32 dim 1 : vector<8x512xf32>, i32 -> vector<8x512xf32>
    %19 = vector.extract_strided_slice %5 {offsets = [3, 0], sizes = [1, 512], strides = [1, 1]} : vector<8x512xf32> to vector<1x512xf32>
    %20 = vector.broadcast %19 : vector<1x512xf32> to vector<8x512xf32>
    %21 = arith.mulf %18, %20 : vector<8x512xf32>
    %c511_i32 = arith.constant 511 : i32
    %22 = tpu.dynamic_rotate %4 by %c511_i32 dim 1 : vector<8x512xf32>, i32 -> vector<8x512xf32>
    %23 = vector.extract_strided_slice %5 {offsets = [4, 0], sizes = [1, 512], strides = [1, 1]} : vector<8x512xf32> to vector<1x512xf32>
    %24 = vector.broadcast %23 : vector<1x512xf32> to vector<8x512xf32>
    %25 = arith.mulf %22, %24 : vector<8x512xf32>
    %c497_i32 = arith.constant 497 : i32
    %26 = tpu.dynamic_rotate %4 by %c497_i32 dim 1 : vector<8x512xf32>, i32 -> vector<8x512xf32>
    %27 = vector.extract_strided_slice %5 {offsets = [5, 0], sizes = [1, 512], strides = [1, 1]} : vector<8x512xf32> to vector<1x512xf32>
    %28 = vector.broadcast %27 : vector<1x512xf32> to vector<8x512xf32>
    %29 = arith.mulf %26, %28 : vector<8x512xf32>
    %c496_i32 = arith.constant 496 : i32
    %30 = tpu.dynamic_rotate %4 by %c496_i32 dim 1 : vector<8x512xf32>, i32 -> vector<8x512xf32>
    %31 = vector.extract_strided_slice %5 {offsets = [6, 0], sizes = [1, 512], strides = [1, 1]} : vector<8x512xf32> to vector<1x512xf32>
    %32 = vector.broadcast %31 : vector<1x512xf32> to vector<8x512xf32>
    %33 = arith.mulf %30, %32 : vector<8x512xf32>
    %c495_i32 = arith.constant 495 : i32
    %34 = tpu.dynamic_rotate %4 by %c495_i32 dim 1 : vector<8x512xf32>, i32 -> vector<8x512xf32>
    %35 = vector.extract_strided_slice %5 {offsets = [7, 0], sizes = [1, 512], strides = [1, 1]} : vector<8x512xf32> to vector<1x512xf32>
    %36 = vector.broadcast %35 : vector<1x512xf32> to vector<8x512xf32>
    %37 = arith.mulf %34, %36 : vector<8x512xf32>
    %38 = tpu.concatenate %9, %13, %17, %21, %4, %25, %29, %33, %37 in 0 : vector<8x512xf32>, vector<8x512xf32>, vector<8x512xf32>, vector<8x512xf32>, vector<8x512xf32>, vector<8x512xf32>, vector<8x512xf32>, vector<8x512xf32>, vector<8x512xf32> -> vector<72x512xf32>
    %c0_6 = arith.constant 0 : index
    %c0_7 = arith.constant 0 : index
    %39 = vector.load %arg3[%c0_6, %c0_7] : memref<8x72xf32, #tpu.memory_space<vmem>>, vector<8x72xf32>
    %cst = arith.constant dense<0.000000e+00> : vector<8x512xf32>
    %40 = tpu.matmul %39, %38, %cst {dimension_numbers = #tpu.dot_dimension_numbers<[1], [0], [0], [1], [0, 0, 1, 1], [], []>} : vector<8x72xf32>, vector<72x512xf32>, vector<8x512xf32> -> vector<8x512xf32>
    %c0_8 = arith.constant 0 : index
    %c0_9 = arith.constant 0 : index
    %41 = vector.load %arg5[%c0_8, %c0_9] : memref<8x1xf32, #tpu.memory_space<vmem>>, vector<8x1xf32>
    %42 = vector.broadcast %41 : vector<8x1xf32> to vector<8x512xf32>
    %43 = arith.addf %40, %42 : vector<8x512xf32>
    %cst_10 = arith.constant 0.000000e+00 : f32
    %44 = vector.broadcast %cst_10 : f32 to vector<8x512xf32>
    %45 = arith.maximumf %43, %44 : vector<8x512xf32>
    %c17_i32_11 = arith.constant 17 : i32
    %46 = tpu.dynamic_rotate %45 by %c17_i32_11 dim 1 : vector<8x512xf32>, i32 -> vector<8x512xf32>
    %47 = vector.extract_strided_slice %5 {offsets = [0, 0], sizes = [1, 512], strides = [1, 1]} : vector<8x512xf32> to vector<1x512xf32>
    %48 = vector.broadcast %47 : vector<1x512xf32> to vector<8x512xf32>
    %49 = arith.mulf %46, %48 : vector<8x512xf32>
    %c16_i32_12 = arith.constant 16 : i32
    %50 = tpu.dynamic_rotate %45 by %c16_i32_12 dim 1 : vector<8x512xf32>, i32 -> vector<8x512xf32>
    %51 = vector.extract_strided_slice %5 {offsets = [1, 0], sizes = [1, 512], strides = [1, 1]} : vector<8x512xf32> to vector<1x512xf32>
    %52 = vector.broadcast %51 : vector<1x512xf32> to vector<8x512xf32>
    %53 = arith.mulf %50, %52 : vector<8x512xf32>
    %c15_i32_13 = arith.constant 15 : i32
    %54 = tpu.dynamic_rotate %45 by %c15_i32_13 dim 1 : vector<8x512xf32>, i32 -> vector<8x512xf32>
    %55 = vector.extract_strided_slice %5 {offsets = [2, 0], sizes = [1, 512], strides = [1, 1]} : vector<8x512xf32> to vector<1x512xf32>
    %56 = vector.broadcast %55 : vector<1x512xf32> to vector<8x512xf32>
    %57 = arith.mulf %54, %56 : vector<8x512xf32>
    %c1_i32_14 = arith.constant 1 : i32
    %58 = tpu.dynamic_rotate %45 by %c1_i32_14 dim 1 : vector<8x512xf32>, i32 -> vector<8x512xf32>
    %59 = vector.extract_strided_slice %5 {offsets = [3, 0], sizes = [1, 512], strides = [1, 1]} : vector<8x512xf32> to vector<1x512xf32>
    %60 = vector.broadcast %59 : vector<1x512xf32> to vector<8x512xf32>
    %61 = arith.mulf %58, %60 : vector<8x512xf32>
    %c511_i32_15 = arith.constant 511 : i32
    %62 = tpu.dynamic_rotate %45 by %c511_i32_15 dim 1 : vector<8x512xf32>, i32 -> vector<8x512xf32>
    %63 = vector.extract_strided_slice %5 {offsets = [4, 0], sizes = [1, 512], strides = [1, 1]} : vector<8x512xf32> to vector<1x512xf32>
    %64 = vector.broadcast %63 : vector<1x512xf32> to vector<8x512xf32>
    %65 = arith.mulf %62, %64 : vector<8x512xf32>
    %c497_i32_16 = arith.constant 497 : i32
    %66 = tpu.dynamic_rotate %45 by %c497_i32_16 dim 1 : vector<8x512xf32>, i32 -> vector<8x512xf32>
    %67 = vector.extract_strided_slice %5 {offsets = [5, 0], sizes = [1, 512], strides = [1, 1]} : vector<8x512xf32> to vector<1x512xf32>
    %68 = vector.broadcast %67 : vector<1x512xf32> to vector<8x512xf32>
    %69 = arith.mulf %66, %68 : vector<8x512xf32>
    %c496_i32_17 = arith.constant 496 : i32
    %70 = tpu.dynamic_rotate %45 by %c496_i32_17 dim 1 : vector<8x512xf32>, i32 -> vector<8x512xf32>
    %71 = vector.extract_strided_slice %5 {offsets = [6, 0], sizes = [1, 512], strides = [1, 1]} : vector<8x512xf32> to vector<1x512xf32>
    %72 = vector.broadcast %71 : vector<1x512xf32> to vector<8x512xf32>
    %73 = arith.mulf %70, %72 : vector<8x512xf32>
    %c495_i32_18 = arith.constant 495 : i32
    %74 = tpu.dynamic_rotate %45 by %c495_i32_18 dim 1 : vector<8x512xf32>, i32 -> vector<8x512xf32>
    %75 = vector.extract_strided_slice %5 {offsets = [7, 0], sizes = [1, 512], strides = [1, 1]} : vector<8x512xf32> to vector<1x512xf32>
    %76 = vector.broadcast %75 : vector<1x512xf32> to vector<8x512xf32>
    %77 = arith.mulf %74, %76 : vector<8x512xf32>
    %78 = tpu.concatenate %49, %53, %57, %61, %45, %65, %69, %73, %77 in 0 : vector<8x512xf32>, vector<8x512xf32>, vector<8x512xf32>, vector<8x512xf32>, vector<8x512xf32>, vector<8x512xf32>, vector<8x512xf32>, vector<8x512xf32>, vector<8x512xf32> -> vector<72x512xf32>
    %c0_19 = arith.constant 0 : index
    %c0_20 = arith.constant 0 : index
    %79 = vector.load %arg4[%c0_19, %c0_20] : memref<8x72xf32, #tpu.memory_space<vmem>>, vector<8x72xf32>
    %cst_21 = arith.constant dense<0.000000e+00> : vector<8x512xf32>
    %80 = tpu.matmul %79, %78, %cst_21 {dimension_numbers = #tpu.dot_dimension_numbers<[1], [0], [0], [1], [0, 0, 1, 1], [], []>} : vector<8x72xf32>, vector<72x512xf32>, vector<8x512xf32> -> vector<8x512xf32>
    %c0_22 = arith.constant 0 : index
    %c0_23 = arith.constant 0 : index
    %81 = vector.load %arg6[%c0_22, %c0_23] : memref<8x1xf32, #tpu.memory_space<vmem>>, vector<8x1xf32>
    %82 = vector.broadcast %81 : vector<8x1xf32> to vector<8x512xf32>
    %83 = arith.addf %80, %82 : vector<8x512xf32>
    %84 = arith.addf %83, %4 : vector<8x512xf32>
    %cst_24 = arith.constant 0.000000e+00 : f32
    %85 = vector.broadcast %cst_24 : f32 to vector<8x512xf32>
    %86 = arith.maximumf %84, %85 : vector<8x512xf32>
    %87 = vector.extract_strided_slice %86 {offsets = [0, 0], sizes = [8, 256], strides = [1, 1]} : vector<8x512xf32> to vector<8x256xf32>
    %c0_25 = arith.constant 0 : index
    %c0_26 = arith.constant 0 : index
    %c0_27 = arith.constant 0 : index
    %88 = vector.load %arg7[%c0_25, %c0_26, %c0_27] : memref<2x8x256xf32, #tpu.memory_space<vmem>>, vector<1x8x256xf32>
    %89 = vector.shape_cast %88 : vector<1x8x256xf32> to vector<8x256xf32>
    %90 = vector.shape_cast %87 : vector<8x256xf32> to vector<1x8x256xf32>
    tpu.vector_store %arg7[%c0_25, %c0_26, %c0_27], %90 {strides = array<i32>} : memref<2x8x256xf32, #tpu.memory_space<vmem>>, vector<1x8x256xf32>,
    %91 = vector.extract_strided_slice %86 {offsets = [0, 256], sizes = [8, 256], strides = [1, 1]} : vector<8x512xf32> to vector<8x256xf32>
    %c1_28 = arith.constant 1 : index
    %c0_29 = arith.constant 0 : index
    %c0_30 = arith.constant 0 : index
    %92 = vector.load %arg7[%c1_28, %c0_29, %c0_30] : memref<2x8x256xf32, #tpu.memory_space<vmem>>, vector<1x8x256xf32>
    %93 = vector.shape_cast %92 : vector<1x8x256xf32> to vector<8x256xf32>
    %94 = vector.shape_cast %91 : vector<8x256xf32> to vector<1x8x256xf32>
    tpu.vector_store %arg7[%c1_28, %c0_29, %c0_30], %94 {strides = array<i32>} : memref<2x8x256xf32, #tpu.memory_space<vmem>>, vector<1x8x256xf32>,
    return
  }
  func.func @transform_0(%arg0: i32) -> (i32, i32, i32) {
    %c0_i32 = arith.constant 0 : i32
    %c0_i32_0 = arith.constant 0 : i32
    %c0_i32_1 = arith.constant 0 : i32
    return %arg0, %c0_i32, %c0_i32_0 : i32, i32, i32
  }
  func.func @transform_1(%arg0: i32) -> (i32, i32) {
    %c0_i32 = arith.constant 0 : i32
    %c0_i32_0 = arith.constant 0 : i32
    %c0_i32_1 = arith.constant 0 : i32
    return %c0_i32, %c0_i32_0 : i32, i32
  }
  func.func @transform_2(%arg0: i32) -> (i32, i32) {
    %c0_i32 = arith.constant 0 : i32
    %c0_i32_0 = arith.constant 0 : i32
    %c0_i32_1 = arith.constant 0 : i32
    return %c0_i32, %c0_i32_0 : i32, i32
  }
  func.func @transform_3(%arg0: i32) -> (i32, i32) {
    %c0_i32 = arith.constant 0 : i32
    %c0_i32_0 = arith.constant 0 : i32
    %c0_i32_1 = arith.constant 0 : i32
    return %c0_i32, %c0_i32_0 : i32, i32
  }
  func.func @transform_4(%arg0: i32) -> (i32, i32) {
    %c0_i32 = arith.constant 0 : i32
    %c0_i32_0 = arith.constant 0 : i32
    %c0_i32_1 = arith.constant 0 : i32
    return %c0_i32, %c0_i32_0 : i32, i32
  }
  func.func @transform_5(%arg0: i32) -> (i32, i32) {
    %c0_i32 = arith.constant 0 : i32
    %c0_i32_0 = arith.constant 0 : i32
    %c0_i32_1 = arith.constant 0 : i32
    return %c0_i32, %c0_i32_0 : i32, i32
  }
  func.func @transform_6(%arg0: i32) -> (i32, i32, i32) {
    %c0_i32 = arith.constant 0 : i32
    %c0_i32_0 = arith.constant 0 : i32
    %c0_i32_1 = arith.constant 0 : i32
    return %arg0, %c0_i32, %c0_i32_0 : i32, i32, i32
  }
}

</mosaic_0001>

<llo_original>
// kernel: tpu_custom_call.1
$region0: #{tpu_custom_call.1}
  #allocation0 [shape = 'u32[]', space=smem, size = 0x4, offset = 0x4, fixed_abs, tag = 'smem constant byte address 0x4 - core index']
  #allocation1 [shape = 'u32[144,128]{1,0:T(1,128)}', space=vmem, size = 0x12000, scoped, tag = 'internal scratch']
  %s0 = inlined_call_operand.hbm [shape: f32[2,8,256], index: 0, kind: input, shape index: {}]
  %s1 = inlined_call_operand.hbm [shape: f32[8,512], index: 1, kind: input, shape index: {}]
  %s2 = inlined_call_operand.vmem [shape: f32[8,72], index: 2, kind: input, shape index: {}]
  %s3 = inlined_call_operand.vmem [shape: f32[8,72], index: 3, kind: input, shape index: {}]
  %s4 = inlined_call_operand.vmem [shape: f32[8,1], index: 4, kind: input, shape index: {}]
  %s5 = inlined_call_operand.vmem [shape: f32[8,1], index: 5, kind: input, shape index: {}]
  %s6 = inlined_call_operand.hbm [shape: f32[2,8,256], index: 6, kind: output, shape index: {}]
  %s7 = sld [smem:[#allocation0]]
  $region42: #{tpu_custom_call.1} parent=0
    _
  %s9 = ssub.s32 1, %s7
  %s10 = scalar_select 0, %s9, %s7
  $region1: #{tpu_custom_call.1} parent=0
    #allocation2 [shape = 'u8[16384]{0}', space=vmem, size = 0x4000, scoped, tag = 'input window, operand 0, single buffered']
    #allocation3 [shape = 's32[1]{0}', space=sflag, size = 0x4, scoped, tag = 'scoped memory for tpu_custom_call.1']
    #allocation4 [shape = 's32[1]{0}', space=sflag, size = 0x4, scoped, tag = 'scoped memory for tpu_custom_call.1']
    #allocation5 [shape = 'u8[16384]{0}', space=vmem, size = 0x4000, scoped, tag = 'input window, operand 1, single buffered']
    #allocation6 [shape = 's32[1]{0}', space=sflag, size = 0x4, scoped, tag = 'scoped memory for tpu_custom_call.1']
    #allocation7 [shape = 'u8[16384]{0}', space=vmem, size = 0x4000, scoped, tag = 'output window, operand 0, single buffered']
    %11 = vsyncpa [#allocation3], 0
    %12 = vsyncpa [#allocation6], 0
    %13 = vsyncpa [#allocation4], 0
    // Predicated region
    $region2: #{tpu_custom_call.1} parent=1 // pred_check
      _
    $region3: #{tpu_custom_call.1} parent=1 // pred_check_branch
      %15 = sbr.rel (0) target = $region5
    $region4: #{tpu_custom_call.1} parent=1 // pred_region
      %s17 = ssub.s32 512, 512
      %18 = vsyncadd [#allocation3], %s17
      %s19 = sshll.u32 [#allocation2], 4
      %s20 = int_to_ptr.vmem [resolvable:$true] %s19
      %25 = dma.hbm_to_vmem [thread:$0]  %s0, 512, %s20, [#allocation3], 256, 256, 16
    $region5: #{tpu_custom_call.1} parent=1 // pred_fallthru
      _
    // Predicated region
    $region6: #{tpu_custom_call.1} parent=1 // pred_check
      _
    $region7: #{tpu_custom_call.1} parent=1 // pred_check_branch
      %27 = sbr.rel (0) target = $region9
    $region8: #{tpu_custom_call.1} parent=1 // pred_region
      %s29 = ssub.s32 512, 512
      %30 = vsyncadd [#allocation6], %s29
      %s32 = sshll.u32 [#allocation5], 4
      %s33 = int_to_ptr.vmem [resolvable:$true] %s32
      %35 = dma.hbm_to_vmem [thread:$0]  %s1, 512, %s33, [#allocation6]
    $region9: #{tpu_custom_call.1} parent=1 // pred_fallthru
      _
    // Predicated region
    $region10: #{tpu_custom_call.1} parent=1 // pred_check
      _
    $region11: #{tpu_custom_call.1} parent=1 // pred_check_branch
      %37 = sbr.rel (0) target = $region13
    $region12: #{tpu_custom_call.1} parent=1 // pred_region
      _
    $region13: #{tpu_custom_call.1} parent=1 // pred_fallthru
      _
    // Predicated region
    $region14: #{tpu_custom_call.1} parent=1 // pred_check
      _
    $region15: #{tpu_custom_call.1} parent=1 // pred_check_branch
      %39 = sbr.rel (0) target = $region17
    $region16: #{tpu_custom_call.1} parent=1 // pred_region
      _
    $region17: #{tpu_custom_call.1} parent=1 // pred_fallthru
      _
    // Predicated region
    $region18: #{tpu_custom_call.1} parent=1 // pred_check
      _
    $region19: #{tpu_custom_call.1} parent=1 // pred_check_branch
      %41 = sbr.rel (0) target = $region21
    $region20: #{tpu_custom_call.1} parent=1 // pred_region
      _
    $region21: #{tpu_custom_call.1} parent=1 // pred_fallthru
      _
    // Predicated region
    $region22: #{tpu_custom_call.1} parent=1 // pred_check
      _
    $region23: #{tpu_custom_call.1} parent=1 // pred_check_branch
      %43 = sbr.rel (0) target = $region25
    $region24: #{tpu_custom_call.1} parent=1 // pred_region
      _
    $region25: #{tpu_custom_call.1} parent=1 // pred_fallthru
      _
    // Predicated region
    $region26: #{tpu_custom_call.1} parent=1 // pred_check
      _
    $region27: #{tpu_custom_call.1} parent=1 // pred_check_branch
      %45 = sbr.rel (0) target = $region29
    $region28: #{tpu_custom_call.1} parent=1 // pred_region
      %46 = dma.done [#allocation3], 512
    $region29: #{tpu_custom_call.1} parent=1 // pred_fallthru
      _
    // Predicated region
    $region30: #{tpu_custom_call.1} parent=1 // pred_check
      _
    $region31: #{tpu_custom_call.1} parent=1 // pred_check_branch
      %48 = sbr.rel (0) target = $region33
    $region32: #{tpu_custom_call.1} parent=1 // pred_region
      %49 = dma.done [#allocation6], 512
    $region33: #{tpu_custom_call.1} parent=1 // pred_fallthru
      _
    %v50 = vld [vmem:[#allocation2] sm:$0xff]
    %v51 = vld [vmem:[#allocation2 + $0x8] sm:$0xff]
    %s52 = scalar_lea.vmem [#allocation2], 16
    %v53 = vld [vmem:[%s52] sm:$0xff]
    %v54 = vld [vmem:[%s52 + $0x8] sm:$0xff]
    %v55 = vld [vmem:[#allocation5] sm:$0xff]
    %v56 = vld [vmem:[#allocation5 + $0x8] sm:$0xff]
    %v57 = vld [vmem:[#allocation5 + $0x10] sm:$0xff]
    %v58 = vld [vmem:[#allocation5 + $0x18] sm:$0xff]
    %59 = vrot.lane.b32.xlu0 %v50, 17
    %v60 = vpop.permute.xlu0 %59
    %61 = vrot.lane.b32.xlu0 %v51, 17
    %v62 = vpop.permute.xlu0 %61
    %63 = vrot.lane.b32.xlu0 %v53, 17
    %v64 = vpop.permute.xlu0 %63
    %65 = vrot.lane.b32.xlu0 %v54, 17
    %v66 = vpop.permute.xlu0 %65
    %v67 = vlaneseq
    %v68 = vand.u32 %v67, 127
    %vm69 = vcmp.lt.s32.totalorder %v68, 17
    %v70 = vsel %vm69, %v64, %v66
    %v71 = vsel %vm69, %v62, %v64
    %v72 = vsel %vm69, %v60, %v62
    %v73 = vsel %vm69, %v66, %v60
    %v74 = vlaneseq
    %v75 = vshrl.u32 %v74, 7
    %v76 = vsub.s32 0, %v75
    %v77 = vrot.slane %v55, %v76
    %v78 = vlaneseq
    %v79 = vshrl.u32 %v78, 7
    %v80 = vsub.s32 0, %v79
    %v81 = vrot.slane %v56, %v80
    %v82 = vlaneseq
    %v83 = vshrl.u32 %v82, 7
    %v84 = vsub.s32 0, %v83
    %v85 = vrot.slane %v57, %v84
    %v86 = vlaneseq
    %v87 = vshrl.u32 %v86, 7
    %v88 = vsub.s32 0, %v87
    %v89 = vrot.slane %v58, %v88
    %v90 = vmul.f32 %v73, %v77
    %v91 = vmul.f32 %v72, %v81
    %v92 = vmul.f32 %v71, %v85
    %v93 = vmul.f32 %v70, %v89
    %94 = vrot.lane.b32.xlu0 %v50, 16
    %v95 = vpop.permute.xlu0 %94
    %96 = vrot.lane.b32.xlu0 %v51, 16
    %v97 = vpop.permute.xlu0 %96
    %98 = vrot.lane.b32.xlu0 %v53, 16
    %v99 = vpop.permute.xlu0 %98
    %100 = vrot.lane.b32.xlu0 %v54, 16
    %v101 = vpop.permute.xlu0 %100
    %vm102 = vcmp.lt.s32.totalorder %v68, 16
    %v103 = vsel %vm102, %v99, %v101
    %v104 = vsel %vm102, %v97, %v99
    %v105 = vsel %vm102, %v95, %v97
    %v106 = vsel %vm102, %v101, %v95
    %v107 = vlaneseq
    %v108 = vshrl.u32 %v107, 7
    %v109 = vsub.s32 1, %v108
    %v110 = vrot.slane %v55, %v109
    %v111 = vlaneseq
    %v112 = vshrl.u32 %v111, 7
    %v113 = vsub.s32 1, %v112
    %v114 = vrot.slane %v56, %v113
    %v115 = vlaneseq
    %v116 = vshrl.u32 %v115, 7
    %v117 = vsub.s32 1, %v116
    %v118 = vrot.slane %v57, %v117
    %v119 = vlaneseq
    %v120 = vshrl.u32 %v119, 7
    %v121 = vsub.s32 1, %v120
    %v122 = vrot.slane %v58, %v121
    %v123 = vmul.f32 %v106, %v110
    %v124 = vmul.f32 %v105, %v114
    %v125 = vmul.f32 %v104, %v118
    %v126 = vmul.f32 %v103, %v122
    %127 = vrot.lane.b32.xlu0 %v50, 15
    %v128 = vpop.permute.xlu0 %127
    %129 = vrot.lane.b32.xlu0 %v51, 15
    %v130 = vpop.permute.xlu0 %129
    %131 = vrot.lane.b32.xlu0 %v53, 15
    %v132 = vpop.permute.xlu0 %131
    %133 = vrot.lane.b32.xlu0 %v54, 15
    %v134 = vpop.permute.xlu0 %133
    %vm135 = vcmp.lt.s32.totalorder %v68, 15
    %v136 = vsel %vm135, %v132, %v134
    %v137 = vsel %vm135, %v130, %v132
    %v138 = vsel %vm135, %v128, %v130
    %v139 = vsel %vm135, %v134, %v128
    %v140 = vlaneseq
    %v141 = vshrl.u32 %v140, 7
    %v142 = vsub.s32 2, %v141
    %v143 = vrot.slane %v55, %v142
    %v144 = vlaneseq
    %v145 = vshrl.u32 %v144, 7
    %v146 = vsub.s32 2, %v145
    %v147 = vrot.slane %v56, %v146
    %v148 = vlaneseq
    %v149 = vshrl.u32 %v148, 7
    %v150 = vsub.s32 2, %v149
    %v151 = vrot.slane %v57, %v150
    %v152 = vlaneseq
    %v153 = vshrl.u32 %v152, 7
    %v154 = vsub.s32 2, %v153
    %v155 = vrot.slane %v58, %v154
    %v156 = vmul.f32 %v139, %v143
    %v157 = vmul.f32 %v138, %v147
    %v158 = vmul.f32 %v137, %v151
    %v159 = vmul.f32 %v136, %v155
    %160 = vrot.lane.b32.xlu0 %v50, 1
    %v161 = vpop.permute.xlu0 %160
    %162 = vrot.lane.b32.xlu0 %v51, 1
    %v163 = vpop.permute.xlu0 %162
    %164 = vrot.lane.b32.xlu0 %v53, 1
    %v165 = vpop.permute.xlu0 %164
    %166 = vrot.lane.b32.xlu0 %v54, 1
    %v167 = vpop.permute.xlu0 %166
    %vm168 = vcmp.lt.s32.totalorder %v68, 1
    %v169 = vsel %vm168, %v165, %v167
    %v170 = vsel %vm168, %v163, %v165
    %v171 = vsel %vm168, %v161, %v163
    %v172 = vsel %vm168, %v167, %v161
    %v173 = vlaneseq
    %v174 = vshrl.u32 %v173, 7
    %v175 = vsub.s32 3, %v174
    %v176 = vrot.slane %v55, %v175
    %v177 = vlaneseq
    %v178 = vshrl.u32 %v177, 7
    %v179 = vsub.s32 3, %v178
    %v180 = vrot.slane %v56, %v179
    %v181 = vlaneseq
    %v182 = vshrl.u32 %v181, 7
    %v183 = vsub.s32 3, %v182
    %v184 = vrot.slane %v57, %v183
    %v185 = vlaneseq
    %v186 = vshrl.u32 %v185, 7
    %v187 = vsub.s32 3, %v186
    %v188 = vrot.slane %v58, %v187
    %v189 = vmul.f32 %v172, %v176
    %v190 = vmul.f32 %v171, %v180
    %v191 = vmul.f32 %v170, %v184
    %v192 = vmul.f32 %v169, %v188
    %193 = vrot.lane.b32.xlu0 %v50, 127
    %v194 = vpop.permute.xlu0 %193
    %195 = vrot.lane.b32.xlu0 %v51, 127
    %v196 = vpop.permute.xlu0 %195
    %197 = vrot.lane.b32.xlu0 %v53, 127
    %v198 = vpop.permute.xlu0 %197
    %199 = vrot.lane.b32.xlu0 %v54, 127
    %v200 = vpop.permute.xlu0 %199
    %vm201 = vcmp.lt.s32.totalorder %v68, 127
    %v202 = vsel %vm201, %v198, %v200
    %v203 = vsel %vm201, %v196, %v198
    %v204 = vsel %vm201, %v194, %v196
    %v205 = vsel %vm201, %v200, %v194
    %v206 = vlaneseq
    %v207 = vshrl.u32 %v206, 7
    %v208 = vsub.s32 4, %v207
    %v209 = vrot.slane %v55, %v208
    %v210 = vlaneseq
    %v211 = vshrl.u32 %v210, 7
    %v212 = vsub.s32 4, %v211
    %v213 = vrot.slane %v56, %v212
    %v214 = vlaneseq
    %v215 = vshrl.u32 %v214, 7
    %v216 = vsub.s32 4, %v215
    %v217 = vrot.slane %v57, %v216
    %v218 = vlaneseq
    %v219 = vshrl.u32 %v218, 7
    %v220 = vsub.s32 4, %v219
    %v221 = vrot.slane %v58, %v220
    %v222 = vmul.f32 %v204, %v209
    %v223 = vmul.f32 %v203, %v213
    %v224 = vmul.f32 %v202, %v217
    %v225 = vmul.f32 %v205, %v221
    %226 = vrot.lane.b32.xlu0 %v50, 113
    %v227 = vpop.permute.xlu0 %226
    %228 = vrot.lane.b32.xlu0 %v51, 113
    %v229 = vpop.permute.xlu0 %228
    %230 = vrot.lane.b32.xlu0 %v53, 113
    %v231 = vpop.permute.xlu0 %230
    %232 = vrot.lane.b32.xlu0 %v54, 113
    %v233 = vpop.permute.xlu0 %232
    %vm234 = vcmp.lt.s32.totalorder %v68, 113
    %v235 = vsel %vm234, %v231, %v233
    %v236 = vsel %vm234, %v229, %v231
    %v237 = vsel %vm234, %v227, %v229
    %v238 = vsel %vm234, %v233, %v227
    %v239 = vlaneseq
    %v240 = vshrl.u32 %v239, 7
    %v241 = vsub.s32 5, %v240
    %v242 = vrot.slane %v55, %v241
    %v243 = vlaneseq
    %v244 = vshrl.u32 %v243, 7
    %v245 = vsub.s32 5, %v244
    %v246 = vrot.slane %v56, %v245
    %v247 = vlaneseq
    %v248 = vshrl.u32 %v247, 7
    %v249 = vsub.s32 5, %v248
    %v250 = vrot.slane %v57, %v249
    %v251 = vlaneseq
    %v252 = vshrl.u32 %v251, 7
    %v253 = vsub.s32 5, %v252
    %v254 = vrot.slane %v58, %v253
    %v255 = vmul.f32 %v237, %v242
    %v256 = vmul.f32 %v236, %v246
    %v257 = vmul.f32 %v235, %v250
    %v258 = vmul.f32 %v238, %v254
    %259 = vrot.lane.b32.xlu0 %v50, 112
    %v260 = vpop.permute.xlu0 %259
    %261 = vrot.lane.b32.xlu0 %v51, 112
    %v262 = vpop.permute.xlu0 %261
    %263 = vrot.lane.b32.xlu0 %v53, 112
    %v264 = vpop.permute.xlu0 %263
    %265 = vrot.lane.b32.xlu0 %v54, 112
    %v266 = vpop.permute.xlu0 %265
    %vm267 = vcmp.lt.s32.totalorder %v68, 112
    %v268 = vsel %vm267, %v264, %v266
    %v269 = vsel %vm267, %v262, %v264
    %v270 = vsel %vm267, %v260, %v262
    %v271 = vsel %vm267, %v266, %v260
    %v272 = vlaneseq
    %v273 = vshrl.u32 %v272, 7
    %v274 = vsub.s32 6, %v273
    %v275 = vrot.slane %v55, %v274
    %v276 = vlaneseq
    %v277 = vshrl.u32 %v276, 7
    %v278 = vsub.s32 6, %v277
    %v279 = vrot.slane %v56, %v278
    %v280 = vlaneseq
    %v281 = vshrl.u32 %v280, 7
    %v282 = vsub.s32 6, %v281
    %v283 = vrot.slane %v57, %v282
    %v284 = vlaneseq
    %v285 = vshrl.u32 %v284, 7
    %v286 = vsub.s32 6, %v285
    %v287 = vrot.slane %v58, %v286
    %v288 = vmul.f32 %v270, %v275
    %v289 = vmul.f32 %v269, %v279
    %v290 = vmul.f32 %v268, %v283
    %v291 = vmul.f32 %v271, %v287
    %292 = vrot.lane.b32.xlu0 %v50, 111
    %v293 = vpop.permute.xlu0 %292
    %294 = vrot.lane.b32.xlu0 %v51, 111
    %v295 = vpop.permute.xlu0 %294
    %296 = vrot.lane.b32.xlu0 %v53, 111
    %v297 = vpop.permute.xlu0 %296
    %298 = vrot.lane.b32.xlu0 %v54, 111
    %v299 = vpop.permute.xlu0 %298
    %vm300 = vcmp.lt.s32.totalorder %v68, 111
    %v301 = vsel %vm300, %v297, %v299
    %v302 = vsel %vm300, %v295, %v297
    %v303 = vsel %vm300, %v293, %v295
    %v304 = vsel %vm300, %v299, %v293
    %v305 = vlaneseq
    %v306 = vshrl.u32 %v305, 7
    %v307 = vsub.s32 7, %v306
    %v308 = vrot.slane %v55, %v307
    %v309 = vlaneseq
    %v310 = vshrl.u32 %v309, 7
    %v311 = vsub.s32 7, %v310
    %v312 = vrot.slane %v56, %v311
    %v313 = vlaneseq
    %v314 = vshrl.u32 %v313, 7
    %v315 = vsub.s32 7, %v314
    %v316 = vrot.slane %v57, %v315
    %v317 = vlaneseq
    %v318 = vshrl.u32 %v317, 7
    %v319 = vsub.s32 7, %v318
    %v320 = vrot.slane %v58, %v319
    %v321 = vmul.f32 %v303, %v308
    %v322 = vmul.f32 %v302, %v312
    %v323 = vmul.f32 %v301, %v316
    %v324 = vmul.f32 %v304, %v320
    %v325 = vld [vmem:[%s2] sm:$0xff]
    %v326 = vld [vmem:[%s4] sm:$0xff]
    %328 = vset.pattern.permute.xlu0 0
    %329 = vperm.xlu0 %328, %v326
    %v330 = vpop.permute.xlu0 %329
    %vm332 = vcmask 588800
    %v334 = vsel %vm332, %v325, 0
    %336 = vmatprep.subr.mxu0 %v91
    %337 = vmatpush1.msra.mxu0 %v90
    %338 = vmatprep.subr.mxu0 %v124
    %339 = vmatpush1.msra.mxu0 %v123
    %340 = vmatprep.subr.mxu0 %v157
    %341 = vmatpush1.msra.mxu0 %v156
    %342 = vmatprep.subr.mxu0 %v190
    %343 = vmatpush1.msra.mxu0 %v189
    %344 = vmatprep.subr.mxu0 %v51
    %345 = vmatpush1.msra.mxu0 %v50
    %346 = vmatprep.subr.mxu0 %v223
    %347 = vmatpush1.msra.mxu0 %v222
    %348 = vmatprep.subr.mxu0 %v256
    %349 = vmatpush1.msra.mxu0 %v255
    %350 = vmatprep.subr.mxu0 %v289
    %351 = vmatpush1.msra.mxu0 %v288
    %352 = vmatprep.subr.mxu0 %v322
    %353 = vmatpush1.msra.mxu0 %v321
    %354 = vmatprep.subr.mxu0 0.0
    %355 = vmatpush1.msra.mxu0 0.0
    %356 = vmatprep.subr.mxu0 0.0
    %357 = vmatpush1.msra.mxu0 0.0
    %358 = vmatprep.subr.mxu0 0.0
    %359 = vmatpush1.msra.mxu0 0.0
    %360 = vmatprep.subr.mxu0 0.0
    %361 = vmatpush1.msra.mxu0 0.0
    %362 = vmatprep.subr.mxu0 0.0
    %363 = vmatpush1.msra.mxu0 0.0
    %364 = vmatprep.subr.mxu0 0.0
    %365 = vmatpush1.msra.mxu0 0.0
    %366 = vmatprep.subr.mxu0 0.0
    %367 = vmatpush1.msra.mxu0 0.0
    %368 = vmatprep.subr.mxu0 0.0
    %369 = vmatpush1.msra.mxu0 0.0
    %370 = vmatprep.subr.mxu0 0.0
    %371 = vmatpush1.msra.mxu0 0.0
    %372 = vmatprep.subr.mxu0 0.0
    %373 = vmatpush1.msra.mxu0 0.0
    %374 = vmatprep.subr.mxu0 0.0
    %375 = vmatpush1.msra.mxu0 0.0
    %376 = vmatprep.subr.mxu0 0.0
    %377 = vmatpush1.msra.mxu0 0.0
    %378 = vmatprep.subr.mxu0 0.0
    %379 = vmatpush1.msra.mxu0 0.0
    %380 = vmatprep.subr.mxu0 0.0
    %381 = vmatpush1.msra.mxu0 0.0
    %382 = vmatprep.subr.mxu0 0.0
    %383 = vmatpush1.msra.mxu0 0.0
    %384 = vmatprep.subr.mxu0 0.0
    %385 = vmatpush1.msra.mxu0 0.0
    %386 = vmatprep.subr.mxu0 0.0
    %387 = vmatpush1.msra.mxu0 0.0
    %388 = vmatprep.subr.mxu0 0.0
    %389 = vmatpush1.msra.mxu0 0.0
    %390 = vmatprep.subr.mxu0 0.0
    %391 = vmatpush1.msra.mxu0 0.0
    %392 = vmatprep.subr.mxu0 0.0
    %393 = vmatpush1.msra.mxu0 0.0
    %394 = vmatprep.subr.mxu0 0.0
    %395 = vmatpush1.msra.mxu0 0.0
    %396 = vmatprep.subr.mxu0 0.0
    %397 = vmatpush1.msra.mxu0 0.0
    %398 = vmatprep.subr.mxu0 0.0
    %399 = vmatpush1.msra.mxu0 0.0
    %400 = vmatprep.mubr.f32.mxu0 0.0
    %401 = vmatmul.mubr.f32.gmra.mrb[0].mxu0 %v334
    %v402 = vpop.f32.mrb[0].mxu0
    %v403 = vadd.f32 %v330, %v402
    %v404 = vpop.f32.mrb[0].mxu0
    %v405 = vadd.f32 %v330, %v404
    %406 = vdwg.mxu0
    %407 = vmatprep.subr.mxu0 %v93
    %408 = vmatpush1.msra.mxu0 %v92
    %409 = vmatprep.subr.mxu0 %v126
    %410 = vmatpush1.msra.mxu0 %v125
    %411 = vmatprep.subr.mxu0 %v159
    %412 = vmatpush1.msra.mxu0 %v158
    %413 = vmatprep.subr.mxu0 %v192
    %414 = vmatpush1.msra.mxu0 %v191
    %415 = vmatprep.subr.mxu0 %v54
    %416 = vmatpush1.msra.mxu0 %v53
    %417 = vmatprep.subr.mxu0 %v225
    %418 = vmatpush1.msra.mxu0 %v224
    %419 = vmatprep.subr.mxu0 %v258
    %420 = vmatpush1.msra.mxu0 %v257
    %421 = vmatprep.subr.mxu0 %v291
    %422 = vmatpush1.msra.mxu0 %v290
    %423 = vmatprep.subr.mxu0 %v324
    %424 = vmatpush1.msra.mxu0 %v323
    %425 = vmatprep.subr.mxu0 0.0
    %426 = vmatpush1.msra.mxu0 0.0
    %427 = vmatprep.subr.mxu0 0.0
    %428 = vmatpush1.msra.mxu0 0.0
    %429 = vmatprep.subr.mxu0 0.0
    %430 = vmatpush1.msra.mxu0 0.0
    %431 = vmatprep.subr.mxu0 0.0
    %432 = vmatpush1.msra.mxu0 0.0
    %433 = vmatprep.subr.mxu0 0.0
    %434 = vmatpush1.msra.mxu0 0.0
    %435 = vmatprep.subr.mxu0 0.0
    %436 = vmatpush1.msra.mxu0 0.0
    %437 = vmatprep.subr.mxu0 0.0
    %438 = vmatpush1.msra.mxu0 0.0
    %439 = vmatprep.subr.mxu0 0.0
    %440 = vmatpush1.msra.mxu0 0.0
    %441 = vmatprep.subr.mxu0 0.0
    %442 = vmatpush1.msra.mxu0 0.0
    %443 = vmatprep.subr.mxu0 0.0
    %444 = vmatpush1.msra.mxu0 0.0
    %445 = vmatprep.subr.mxu0 0.0
    %446 = vmatpush1.msra.mxu0 0.0
    %447 = vmatprep.subr.mxu0 0.0
    %448 = vmatpush1.msra.mxu0 0.0
    %449 = vmatprep.subr.mxu0 0.0
    %450 = vmatpush1.msra.mxu0 0.0
    %451 = vmatprep.subr.mxu0 0.0
    %452 = vmatpush1.msra.mxu0 0.0
    %453 = vmatprep.subr.mxu0 0.0
    %454 = vmatpush1.msra.mxu0 0.0
    %455 = vmatprep.subr.mxu0 0.0
    %456 = vmatpush1.msra.mxu0 0.0
    %457 = vmatprep.subr.mxu0 0.0
    %458 = vmatpush1.msra.mxu0 0.0
    %459 = vmatprep.subr.mxu0 0.0
    %460 = vmatpush1.msra.mxu0 0.0
    %461 = vmatprep.subr.mxu0 0.0
    %462 = vmatpush1.msra.mxu0 0.0
    %463 = vmatprep.subr.mxu0 0.0
    %464 = vmatpush1.msra.mxu0 0.0
    %465 = vmatprep.subr.mxu0 0.0
    %466 = vmatpush1.msra.mxu0 0.0
    %467 = vmatprep.subr.mxu0 0.0
    %468 = vmatpush1.msra.mxu0 0.0
    %469 = vmatprep.subr.mxu0 0.0
    %470 = vmatpush1.msra.mxu0 0.0
    %471 = vmatprep.mubr.f32.mxu0 0.0
    %472 = vmatmul.mubr.f32.gmra.mrb[0].mxu0 %v334
    %v473 = vpop.f32.mrb[0].mxu0
    %v474 = vadd.f32 %v330, %v473
    %v475 = vpop.f32.mrb[0].mxu0
    %v476 = vadd.f32 %v330, %v475
    %477 = vdwg.mxu0
    %v478 = vmax.f32 %v403, 0.0
    %v479 = vmax.f32 %v405, 0.0
    %v480 = vmax.f32 %v474, 0.0
    %v481 = vmax.f32 %v476, 0.0
    %482 = vrot.lane.b32.xlu0 %v478, 17
    %v483 = vpop.permute.xlu0 %482
    %484 = vrot.lane.b32.xlu0 %v479, 17
    %v485 = vpop.permute.xlu0 %484
    %486 = vrot.lane.b32.xlu0 %v480, 17
    %v487 = vpop.permute.xlu0 %486
    %488 = vrot.lane.b32.xlu0 %v481, 17
    %v489 = vpop.permute.xlu0 %488
    %v490 = vsel %vm69, %v487, %v489
    %v491 = vsel %vm69, %v485, %v487
    %v492 = vsel %vm69, %v483, %v485
    %v493 = vsel %vm69, %v489, %v483
    %v494 = vmul.f32 %v493, %v77
    %v495 = vmul.f32 %v492, %v81
    %v496 = vmul.f32 %v491, %v85
    %v497 = vmul.f32 %v490, %v89
    %498 = vrot.lane.b32.xlu0 %v478, 16
    %v499 = vpop.permute.xlu0 %498
    %500 = vrot.lane.b32.xlu0 %v479, 16
    %v501 = vpop.permute.xlu0 %500
    %502 = vrot.lane.b32.xlu0 %v480, 16
    %v503 = vpop.permute.xlu0 %502
    %504 = vrot.lane.b32.xlu0 %v481, 16
    %v505 = vpop.permute.xlu0 %504
    %v506 = vsel %vm102, %v503, %v505
    %v507 = vsel %vm102, %v501, %v503
    %v508 = vsel %vm102, %v499, %v501
    %v509 = vsel %vm102, %v505, %v499
    %v510 = vmul.f32 %v509, %v110
    %v511 = vmul.f32 %v508, %v114
    %v512 = vmul.f32 %v507, %v118
    %v513 = vmul.f32 %v506, %v122
    %514 = vrot.lane.b32.xlu0 %v478, 15
    %v515 = vpop.permute.xlu0 %514
    %516 = vrot.lane.b32.xlu0 %v479, 15
    %v517 = vpop.permute.xlu0 %516
    %518 = vrot.lane.b32.xlu0 %v480, 15
    %v519 = vpop.permute.xlu0 %518
    %520 = vrot.lane.b32.xlu0 %v481, 15
    %v521 = vpop.permute.xlu0 %520
    %v522 = vsel %vm135, %v519, %v521
    %v523 = vsel %vm135, %v517, %v519
    %v524 = vsel %vm135, %v515, %v517
    %v525 = vsel %vm135, %v521, %v515
    %v526 = vmul.f32 %v525, %v143
    %v527 = vmul.f32 %v524, %v147
    %v528 = vmul.f32 %v523, %v151
    %v529 = vmul.f32 %v522, %v155
    %530 = vrot.lane.b32.xlu0 %v478, 1
    %v531 = vpop.permute.xlu0 %530
    %532 = vrot.lane.b32.xlu0 %v479, 1
    %v533 = vpop.permute.xlu0 %532
    %534 = vrot.lane.b32.xlu0 %v480, 1
    %v535 = vpop.permute.xlu0 %534
    %536 = vrot.lane.b32.xlu0 %v481, 1
    %v537 = vpop.permute.xlu0 %536
    %v538 = vsel %vm168, %v535, %v537
    %v539 = vsel %vm168, %v533, %v535
    %v540 = vsel %vm168, %v531, %v533
    %v541 = vsel %vm168, %v537, %v531
    %v542 = vmul.f32 %v541, %v176
    %v543 = vmul.f32 %v540, %v180
    %v544 = vmul.f32 %v539, %v184
    %v545 = vmul.f32 %v538, %v188
    %546 = vrot.lane.b32.xlu0 %v478, 127
    %v547 = vpop.permute.xlu0 %546
    %548 = vrot.lane.b32.xlu0 %v479, 127
    %v549 = vpop.permute.xlu0 %548
    %550 = vrot.lane.b32.xlu0 %v480, 127
    %v551 = vpop.permute.xlu0 %550
    %552 = vrot.lane.b32.xlu0 %v481, 127
    %v553 = vpop.permute.xlu0 %552
    %v554 = vsel %vm201, %v551, %v553
    %v555 = vsel %vm201, %v549, %v551
    %v556 = vsel %vm201, %v547, %v549
    %v557 = vsel %vm201, %v553, %v547
    %v558 = vmul.f32 %v556, %v209
    %v559 = vmul.f32 %v555, %v213
    %v560 = vmul.f32 %v554, %v217
    %v561 = vmul.f32 %v557, %v221
    %562 = vrot.lane.b32.xlu0 %v478, 113
    %v563 = vpop.permute.xlu0 %562
    %564 = vrot.lane.b32.xlu0 %v479, 113
    %v565 = vpop.permute.xlu0 %564
    %566 = vrot.lane.b32.xlu0 %v480, 113
    %v567 = vpop.permute.xlu0 %566
    %568 = vrot.lane.b32.xlu0 %v481, 113
    %v569 = vpop.permute.xlu0 %568
    %v570 = vsel %vm234, %v567, %v569
    %v571 = vsel %vm234, %v565, %v567
    %v572 = vsel %vm234, %v563, %v565
    %v573 = vsel %vm234, %v569, %v563
    %v574 = vmul.f32 %v572, %v242
    %v575 = vmul.f32 %v571, %v246
    %v576 = vmul.f32 %v570, %v250
    %v577 = vmul.f32 %v573, %v254
    %578 = vrot.lane.b32.xlu0 %v478, 112
    %v579 = vpop.permute.xlu0 %578
    %580 = vrot.lane.b32.xlu0 %v479, 112
    %v581 = vpop.permute.xlu0 %580
    %582 = vrot.lane.b32.xlu0 %v480, 112
    %v583 = vpop.permute.xlu0 %582
    %584 = vrot.lane.b32.xlu0 %v481, 112
    %v585 = vpop.permute.xlu0 %584
    %v586 = vsel %vm267, %v583, %v585
    %v587 = vsel %vm267, %v581, %v583
    %v588 = vsel %vm267, %v579, %v581
    %v589 = vsel %vm267, %v585, %v579
    %v590 = vmul.f32 %v588, %v275
    %v591 = vmul.f32 %v587, %v279
    %v592 = vmul.f32 %v586, %v283
    %v593 = vmul.f32 %v589, %v287
    %594 = vrot.lane.b32.xlu0 %v478, 111
    %v595 = vpop.permute.xlu0 %594
    %596 = vrot.lane.b32.xlu0 %v479, 111
    %v597 = vpop.permute.xlu0 %596
    %598 = vrot.lane.b32.xlu0 %v480, 111
    %v599 = vpop.permute.xlu0 %598
    %600 = vrot.lane.b32.xlu0 %v481, 111
    %v601 = vpop.permute.xlu0 %600
    %v602 = vsel %vm300, %v599, %v601
    %v603 = vsel %vm300, %v597, %v599
    %v604 = vsel %vm300, %v595, %v597
    %v605 = vsel %vm300, %v601, %v595
    %v606 = vmul.f32 %v604, %v308
    %v607 = vmul.f32 %v603, %v312
    %v608 = vmul.f32 %v602, %v316
    %v609 = vmul.f32 %v605, %v320
    %v610 = vld [vmem:[%s3] sm:$0xff]
    %v611 = vld [vmem:[%s5] sm:$0xff]
    %613 = vset.pattern.permute.xlu0 0
    %614 = vperm.xlu0 %613, %v611
    %v615 = vpop.permute.xlu0 %614
    %v618 = vsel %vm332, %v610, 0
    %620 = vmatprep.subr.mxu0 %v495
    %621 = vmatpush1.msra.mxu0 %v494
    %622 = vmatprep.subr.mxu0 %v511
    %623 = vmatpush1.msra.mxu0 %v510
    %624 = vmatprep.subr.mxu0 %v527
    %625 = vmatpush1.msra.mxu0 %v526
    %626 = vmatprep.subr.mxu0 %v543
    %627 = vmatpush1.msra.mxu0 %v542
    %628 = vmatprep.subr.mxu0 %v479
    %629 = vmatpush1.msra.mxu0 %v478
    %630 = vmatprep.subr.mxu0 %v559
    %631 = vmatpush1.msra.mxu0 %v558
    %632 = vmatprep.subr.mxu0 %v575
    %633 = vmatpush1.msra.mxu0 %v574
    %634 = vmatprep.subr.mxu0 %v591
    %635 = vmatpush1.msra.mxu0 %v590
    %636 = vmatprep.subr.mxu0 %v607
    %637 = vmatpush1.msra.mxu0 %v606
    %638 = vmatprep.subr.mxu0 0.0
    %639 = vmatpush1.msra.mxu0 0.0
    %640 = vmatprep.subr.mxu0 0.0
    %641 = vmatpush1.msra.mxu0 0.0
    %642 = vmatprep.subr.mxu0 0.0
    %643 = vmatpush1.msra.mxu0 0.0
    %644 = vmatprep.subr.mxu0 0.0
    %645 = vmatpush1.msra.mxu0 0.0
    %646 = vmatprep.subr.mxu0 0.0
    %647 = vmatpush1.msra.mxu0 0.0
    %648 = vmatprep.subr.mxu0 0.0
    %649 = vmatpush1.msra.mxu0 0.0
    %650 = vmatprep.subr.mxu0 0.0
    %651 = vmatpush1.msra.mxu0 0.0
    %652 = vmatprep.subr.mxu0 0.0
    %653 = vmatpush1.msra.mxu0 0.0
    %654 = vmatprep.subr.mxu0 0.0
    %655 = vmatpush1.msra.mxu0 0.0
    %656 = vmatprep.subr.mxu0 0.0
    %657 = vmatpush1.msra.mxu0 0.0
    %658 = vmatprep.subr.mxu0 0.0
    %659 = vmatpush1.msra.mxu0 0.0
    %660 = vmatprep.subr.mxu0 0.0
    %661 = vmatpush1.msra.mxu0 0.0
    %662 = vmatprep.subr.mxu0 0.0
    %663 = vmatpush1.msra.mxu0 0.0
    %664 = vmatprep.subr.mxu0 0.0
    %665 = vmatpush1.msra.mxu0 0.0
    %666 = vmatprep.subr.mxu0 0.0
    %667 = vmatpush1.msra.mxu0 0.0
    %668 = vmatprep.subr.mxu0 0.0
    %669 = vmatpush1.msra.mxu0 0.0
    %670 = vmatprep.subr.mxu0 0.0
    %671 = vmatpush1.msra.mxu0 0.0
    %672 = vmatprep.subr.mxu0 0.0
    %673 = vmatpush1.msra.mxu0 0.0
    %674 = vmatprep.subr.mxu0 0.0
    %675 = vmatpush1.msra.mxu0 0.0
    %676 = vmatprep.subr.mxu0 0.0
    %677 = vmatpush1.msra.mxu0 0.0
    %678 = vmatprep.subr.mxu0 0.0
    %679 = vmatpush1.msra.mxu0 0.0
    %680 = vmatprep.subr.mxu0 0.0
    %681 = vmatpush1.msra.mxu0 0.0
    %682 = vmatprep.subr.mxu0 0.0
    %683 = vmatpush1.msra.mxu0 0.0
    %684 = vmatprep.mubr.f32.mxu0 0.0
    %685 = vmatmul.mubr.f32.gmra.mrb[0].mxu0 %v618
    %v686 = vpop.f32.mrb[0].mxu0
    %v687 = vadd.f32 %v615, %v686
    %v688 = vpop.f32.mrb[0].mxu0
    %v689 = vadd.f32 %v615, %v688
    %690 = vdwg.mxu0
    %691 = vmatprep.subr.mxu0 %v497
    %692 = vmatpush1.msra.mxu0 %v496
    %693 = vmatprep.subr.mxu0 %v513
    %694 = vmatpush1.msra.mxu0 %v512
    %695 = vmatprep.subr.mxu0 %v529
    %696 = vmatpush1.msra.mxu0 %v528
    %697 = vmatprep.subr.mxu0 %v545
    %698 = vmatpush1.msra.mxu0 %v544
    %699 = vmatprep.subr.mxu0 %v481
    %700 = vmatpush1.msra.mxu0 %v480
    %701 = vmatprep.subr.mxu0 %v561
    %702 = vmatpush1.msra.mxu0 %v560
    %703 = vmatprep.subr.mxu0 %v577
    %704 = vmatpush1.msra.mxu0 %v576
    %705 = vmatprep.subr.mxu0 %v593
    %706 = vmatpush1.msra.mxu0 %v592
    %707 = vmatprep.subr.mxu0 %v609
    %708 = vmatpush1.msra.mxu0 %v608
    %709 = vmatprep.subr.mxu0 0.0
    %710 = vmatpush1.msra.mxu0 0.0
    %711 = vmatprep.subr.mxu0 0.0
    %712 = vmatpush1.msra.mxu0 0.0
    %713 = vmatprep.subr.mxu0 0.0
    %714 = vmatpush1.msra.mxu0 0.0
    %715 = vmatprep.subr.mxu0 0.0
    %716 = vmatpush1.msra.mxu0 0.0
    %717 = vmatprep.subr.mxu0 0.0
    %718 = vmatpush1.msra.mxu0 0.0
    %719 = vmatprep.subr.mxu0 0.0
    %720 = vmatpush1.msra.mxu0 0.0
    %721 = vmatprep.subr.mxu0 0.0
    %722 = vmatpush1.msra.mxu0 0.0
    %723 = vmatprep.subr.mxu0 0.0
    %724 = vmatpush1.msra.mxu0 0.0
    %725 = vmatprep.subr.mxu0 0.0
    %726 = vmatpush1.msra.mxu0 0.0
    %727 = vmatprep.subr.mxu0 0.0
    %728 = vmatpush1.msra.mxu0 0.0
    %729 = vmatprep.subr.mxu0 0.0
    %730 = vmatpush1.msra.mxu0 0.0
    %731 = vmatprep.subr.mxu0 0.0
    %732 = vmatpush1.msra.mxu0 0.0
    %733 = vmatprep.subr.mxu0 0.0
    %734 = vmatpush1.msra.mxu0 0.0
    %735 = vmatprep.subr.mxu0 0.0
    %736 = vmatpush1.msra.mxu0 0.0
    %737 = vmatprep.subr.mxu0 0.0
    %738 = vmatpush1.msra.mxu0 0.0
    %739 = vmatprep.subr.mxu0 0.0
    %740 = vmatpush1.msra.mxu0 0.0
    %741 = vmatprep.subr.mxu0 0.0
    %742 = vmatpush1.msra.mxu0 0.0
    %743 = vmatprep.subr.mxu0 0.0
    %744 = vmatpush1.msra.mxu0 0.0
    %745 = vmatprep.subr.mxu0 0.0
    %746 = vmatpush1.msra.mxu0 0.0
    %747 = vmatprep.subr.mxu0 0.0
    %748 = vmatpush1.msra.mxu0 0.0
    %749 = vmatprep.subr.mxu0 0.0
    %750 = vmatpush1.msra.mxu0 0.0
    %751 = vmatprep.subr.mxu0 0.0
    %752 = vmatpush1.msra.mxu0 0.0
    %753 = vmatprep.subr.mxu0 0.0
    %754 = vmatpush1.msra.mxu0 0.0
    %755 = vmatprep.mubr.f32.mxu0 0.0
    %756 = vmatmul.mubr.f32.gmra.mrb[0].mxu0 %v618
    %v757 = vpop.f32.mrb[0].mxu0
    %v758 = vadd.f32 %v615, %v757
    %v759 = vpop.f32.mrb[0].mxu0
    %v760 = vadd.f32 %v615, %v759
    %761 = vdwg.mxu0
    %v762 = vadd.f32 %v687, %v50
    %v763 = vadd.f32 %v689, %v51
    %v764 = vadd.f32 %v758, %v53
    %v765 = vadd.f32 %v760, %v54
    %v766 = vmax.f32 %v762, 0.0
    %v767 = vmax.f32 %v763, 0.0
    %v768 = vmax.f32 %v764, 0.0
    %v769 = vmax.f32 %v765, 0.0
    %770 = vst [vmem:[#allocation7] sm:$0xff] %v766
    %771 = vst [vmem:[#allocation7 + $0x8] sm:$0xff] %v767
    %s772 = scalar_lea.vmem [#allocation7], 16
    %773 = vst [vmem:[%s772] sm:$0xff] %v768
    %774 = vst [vmem:[%s772 + $0x8] sm:$0xff] %v769
    // Predicated region
    $region34: #{tpu_custom_call.1} parent=1 // pred_check
      _
    $region35: #{tpu_custom_call.1} parent=1 // pred_check_branch
      %776 = sbr.rel (0) target = $region37
    $region36: #{tpu_custom_call.1} parent=1 // pred_region
      %s778 = ssub.s32 512, 512
      %779 = vsyncadd [#allocation4], %s778
      %s780 = sshll.u32 [#allocation7], 4
      %s781 = int_to_ptr.vmem [resolvable:$true] %s780
      %786 = dma.vmem_to_hbm [thread:$0]  %s781, 512, %s6, [#allocation4], 256, 256, 16
    $region37: #{tpu_custom_call.1} parent=1 // pred_fallthru
      _
    // Predicated region
    $region38: #{tpu_custom_call.1} parent=1 // pred_check
      _
    $region39: #{tpu_custom_call.1} parent=1 // pred_check_branch
      %788 = sbr.rel (0) target = $region41
    $region40: #{tpu_custom_call.1} parent=1 // pred_region
      %789 = dma.done [#allocation4], 512
    $region41: #{tpu_custom_call.1} parent=1 // pred_fallthru
      _
    %790 = vsyncpa [#allocation3], 1
    %791 = vsyncpa [#allocation6], 1
    %792 = vsyncpa [#allocation4], 1

</llo_original>
